<compile_context>
chip_gen: v6e
topology: v6e:2x2x1
jax: 0.10.0
libtpu: 0.0.40
codegen_flags: <defaults>
</compile_context>

<pallas_src>
import jax
import jax.numpy as jnp
from jax.experimental import pallas as pl
from jax.experimental.pallas import tpu as pltpu

LN_EPS = 1e-5  # torch.nn.LayerNorm default


# ----------------------------- kernels ------------------------------------- #

def _ln_epilogue(acc_f32, g_ref, b_ref, o_ref):
    """ReLU + LayerNorm(affine) on a full-width f32 accumulator."""
    y = jnp.maximum(acc_f32, 0.0)                       # ReLU (VPU)
    inv_n = jnp.float32(1.0 / y.shape[-1])
    mean = jnp.sum(y, axis=-1, keepdims=True) * inv_n   # XLU reduction
    yc = y - mean
    var = jnp.sum(yc * yc, axis=-1, keepdims=True) * inv_n  # centered two-pass
    scale = g_ref[...] * jax.lax.rsqrt(var + LN_EPS)    # gamma folded; rsqrt -> EUP
    o_ref[...] = (yc * scale + b_ref[...]).astype(o_ref.dtype)


def _kernel_single_k(x_ref, w_ref, g_ref, b_ref, o_ref):
    # W fully resident: one MXU matmul then the fused epilogue.
    acc = jnp.dot(x_ref[...], w_ref[...], preferred_element_type=jnp.float32)
    _ln_epilogue(acc, g_ref, b_ref, o_ref)


def _kernel_multi_k_accout(x_ref, w_ref, g_ref, b_ref, o_ref):
    # out_dtype == f32: o_ref (resident across the k axis) doubles as accumulator.
    k = pl.program_id(1)

    @pl.when(k == 0)
    def _():
        o_ref[...] = jnp.zeros_like(o_ref)

    o_ref[...] += jnp.dot(x_ref[...], w_ref[...], preferred_element_type=jnp.float32)

    @pl.when(k == pl.num_programs(1) - 1)
    def _():
        _ln_epilogue(o_ref[...], g_ref, b_ref, o_ref)


def _kernel_multi_k_scratch(x_ref, w_ref, g_ref, b_ref, o_ref, acc_ref):
    # Generic multi-k path with an explicit f32 VMEM accumulator.
    k = pl.program_id(1)

    @pl.when(k == 0)
    def _():
        acc_ref[...] = jnp.zeros_like(acc_ref)

    acc_ref[...] += jnp.dot(x_ref[...], w_ref[...], preferred_element_type=jnp.float32)

    @pl.when(k == pl.num_programs(1) - 1)
    def _():
        _ln_epilogue(acc_ref[...], g_ref, b_ref, o_ref)


# --------------------------- tile selection --------------------------------- #

def _tpu_generation():
    try:
        kind = jax.devices()[0].device_kind.lower()
    except Exception:
        return 6
    if "v7" in kind or "7x" in kind:
        return 7
    if "v6" in kind:
        return 6
    if "v5" in kind:
        return 5
    return 6


def _divisors_desc(n, align=1, cap=None):
    cap = n if cap is None else max(1, min(cap, n))
    divs = [t for t in range(cap, 0, -1) if n % t == 0]
    aligned = [t for t in divs if t % align == 0]
    return aligned if aligned else divs


def _batch_tile_candidates(B, align, even_tiles):
    divs = _divisors_desc(B, align)
    if even_tiles:
        even = [t for t in divs if (B // t) % 2 == 0]
        odd = [t for t in divs if (B // t) % 2 != 0]
        if even:
            return even + odd
    return divs


def _pick_tiles(B, N_in, N_out, x_it, w_it, out_it, vmem_budget, even_batch_tiles):
    b_align = 16 if x_it == 2 else 8          # bf16 packs 16 sublanes / vreg
    k_align = 256 if N_in % 256 == 0 else (128 if N_in % 128 == 0 else 1)
    fixed = 2 * 2 * N_out * 4                 # gamma + beta blocks

    def fits(tb, tk):
        return (fixed
                + 2 * tk * N_out * w_it       # W tiles (double-buffered)
                + 2 * tb * tk * x_it          # x tiles
                + 2 * tb * N_out * out_it     # out tiles
                + tb * N_out * 4              # f32 accumulator / epilogue temps
                ) <= vmem_budget

    b_cands = _batch_tile_candidates(B, b_align, even_batch_tiles)
    k_cands = _divisors_desc(N_in, k_align)   # k_cands[0] == N_in (resident W)

    # tile_b is the primary knob (each extra batch tile can re-stream W from HBM);
    # prefer a fully resident W and only then shrink tile_k.
    for tb in b_cands:
        for tk in k_cands:
            if fits(tb, tk):
                return tb, tk
    return b_cands[-1], k_cands[-1]


# ------------------------------ wrapper ------------------------------------- #

def linblock(x, w_t, gamma, beta, *, tile_b=None, tile_k=None,
             compute_dtype=jnp.bfloat16, out_dtype=None):
    """Fused Linear(bias=False) -> ReLU -> LayerNorm.

    x: (B, N_in); w_t: (N_in, N_out) (PyTorch weight transposed);
    gamma/beta: (N_out,) LayerNorm affine parameters.
    """
    B, N_in = x.shape
    K2, N_out = w_t.shape
    assert K2 == N_in, (K2, N_in)
    out_dtype = x.dtype if out_dtype is None else out_dtype

    # Pre-cast once in the wrapper: blocks land in VMEM in their HBM dtype, so a
    # bf16 W halves the dominant HBM stream and the W-tile VMEM footprint, and it
    # removes the per-step in-kernel cast. (Weight casts amortize across calls.)
    xc = x.astype(compute_dtype)
    wc = w_t.astype(compute_dtype)
    gamma2 = gamma.reshape(1, N_out).astype(jnp.float32)
    beta2 = beta.reshape(1, N_out).astype(jnp.float32)

    x_it = jnp.dtype(compute_dtype).itemsize
    w_it = x_it
    out_it = jnp.dtype(out_dtype).itemsize

    gen = _tpu_generation()
    if gen >= 7:
        vmem_budget = 48 * 1024 * 1024   # v7x: 64 MiB physical, leave scratch headroom
        vmem_cap = 48 * 1024 * 1024
        even_batch_tiles = True          # 2 TensorCores: even "parallel" tile count
    else:
        vmem_budget = 100 * 1024 * 1024  # v5e/v6e: 128 MiB physical
        vmem_cap = 104 * 1024 * 1024
        even_batch_tiles = False         # single TC: no forced batch split

    auto_tb, auto_tk = _pick_tiles(B, N_in, N_out, x_it, w_it, out_it,
                                   vmem_budget, even_batch_tiles)
    tile_b = auto_tb if tile_b is None else tile_b
    tile_k = auto_tk if tile_k is None else tile_k
    assert B % tile_b == 0, (B, tile_b)
    assert N_in % tile_k == 0, (N_in, tile_k)
    # TODO(synk): pad B / N_in / N_out to tile multiples (and slice after the call)
    # when shapes are not divisible; for very large N_out, tile N_out with a
    # two-pass LayerNorm (partial s1/s2 scratch) so v7x's 64 MiB is respected.

    num_b = B // tile_b
    num_k = N_in // tile_k
    multi_k = num_k > 1

    footprint = (2 * tile_b * tile_k * x_it
                 + 2 * tile_k * N_out * w_it
                 + 2 * tile_b * N_out * out_it
                 + 2 * 2 * N_out * 4
                 + tile_b * N_out * 4)
    vmem_limit = int(min(max(int(footprint * 1.5), 32 * 1024 * 1024), vmem_cap))

    w_streams = num_b if multi_k else 1  # resident W is DMA'd exactly once
    cost = pl.CostEstimate(
        flops=2 * B * N_in * N_out,
        transcendentals=B,  # one rsqrt per row
        bytes_accessed=(B * N_in * x_it + w_streams * N_in * N_out * w_it
                        + B * N_out * out_it + 2 * N_out * 4),
    )

    if not multi_k:
        kernel = _kernel_single_k
        grid_spec = pltpu.PrefetchScalarGridSpec(
            num_scalar_prefetch=0,
            grid=(num_b,),
            in_specs=[
                pl.BlockSpec((tile_b, N_in), lambda i: (i, 0)),
                pl.BlockSpec((N_in, N_out), lambda i: (0, 0)),
                pl.BlockSpec((1, N_out), lambda i: (0, 0)),
                pl.BlockSpec((1, N_out), lambda i: (0, 0)),
            ],
            out_specs=pl.BlockSpec((tile_b, N_out), lambda i: (i, 0)),
        )
        dims = ("parallel",)
    else:
        in_specs = [
            pl.BlockSpec((tile_b, tile_k), lambda i, k: (i, k)),
            pl.BlockSpec((tile_k, N_out), lambda i, k: (k, 0)),
            pl.BlockSpec((1, N_out), lambda i, k: (0, 0)),
            pl.BlockSpec((1, N_out), lambda i, k: (0, 0)),
        ]
        out_spec = pl.BlockSpec((tile_b, N_out), lambda i, k: (i, 0))
        if jnp.dtype(out_dtype) == jnp.dtype(jnp.float32):
            kernel = _kernel_multi_k_accout   # o_ref doubles as the accumulator
            scratch = []
        else:
            kernel = _kernel_multi_k_scratch
            scratch = [pltpu.VMEM((tile_b, N_out), jnp.float32)]
        grid_spec = pltpu.PrefetchScalarGridSpec(
            num_scalar_prefetch=0,
            grid=(num_b, num_k),
            in_specs=in_specs,
            out_specs=out_spec,
            scratch_shapes=scratch,
        )
        dims = ("parallel", "arbitrary")

    return pl.pallas_call(
        kernel,
        out_shape=jax.ShapeDtypeStruct((B, N_out), out_dtype),
        grid_spec=grid_spec,
        compiler_params=pltpu.CompilerParams(
            dimension_semantics=dims,
            vmem_limit_bytes=vmem_limit,
        ),
        cost_estimate=cost,
    )(xc, wc, gamma2, beta2)


def linblock_ref(x, w_t, gamma, beta):
    y = jnp.maximum(x @ w_t, 0.0)
    mean = jnp.mean(y, axis=-1, keepdims=True)
    var = jnp.mean((y - mean) ** 2, axis=-1, keepdims=True)
    return (y - mean) / jnp.sqrt(var + LN_EPS) * gamma + beta


if __name__ == "__main__":
    # Small shapes consistent with the module (B x N_in -> B x N_out), chosen so
    # both the resident-W single-k path and the tiled multi-k paths are exercised.
    B, N_in, N_out = 256, 256, 128

    key = jax.random.PRNGKey(0)
    kx, kw, kg, kb = jax.random.split(key, 4)

    x = jax.random.normal(kx, (B, N_in), dtype=jnp.float32)
    # nn.Linear weight is (N_out, N_in); build it then transpose for the kernel.
    w = jax.random.normal(kw, (N_out, N_in), dtype=jnp.float32) * (1.0 / jnp.sqrt(N_in))
    w_t = w.T
    gamma = 1.0 + 0.1 * jax.random.normal(kg, (N_out,), dtype=jnp.float32)
    beta = 0.1 * jax.random.normal(kb, (N_out,), dtype=jnp.float32)

    ref = linblock_ref(x, w_t, gamma, beta)

    # 1) Exact f32-MXU path; forced tile_k exercises the multi-k path where the
    #    f32 output block itself is the accumulator.
    out_f32 = jax.block_until_ready(
        linblock(x, w_t, gamma, beta, tile_b=64, tile_k=128,
                 compute_dtype=jnp.float32))
    assert out_f32.shape == (B, N_out)
    assert jnp.allclose(out_f32, ref, atol=1e-4, rtol=1e-4)

    # 2) Default performance path: bf16 operands (pre-cast), auto tiles
    #    (resident W, single K step; even batch-tile split on v7x).
    out_bf16 = jax.block_until_ready(linblock(x, w_t, gamma, beta))
    assert out_bf16.shape == (B, N_out)
    assert jnp.allclose(out_bf16, ref, atol=5e-2, rtol=5e-2)

    # 3) Multi-k path with a non-f32 output (exercises the VMEM-scratch variant).
    out_bf16o = jax.block_until_ready(
        linblock(x, w_t, gamma, beta, tile_b=128, tile_k=128,
                 out_dtype=jnp.bfloat16))
    assert out_bf16o.shape == (B, N_out)
    assert jnp.max(jnp.abs(out_bf16o.astype(jnp.float32) - ref)) < 0.1

    print("KERNEL_OK")
</pallas_src>

<mosaic_0001>
module attributes {stable_mosaic.version = 11 : i64} {
  func.func @_kernel_multi_k_accout(%arg0: i32, %arg1: i32, %arg2: memref<64x128xf32, #tpu.memory_space<vmem>>, %arg3: memref<128x128xf32, #tpu.memory_space<vmem>>, %arg4: memref<1x128xf32, #tpu.memory_space<vmem>>, %arg5: memref<1x128xf32, #tpu.memory_space<vmem>>, %arg6: memref<64x128xf32, #tpu.memory_space<vmem>>) attributes {dimension_semantics = [#tpu.dimension_semantics<parallel>, #tpu.dimension_semantics<arbitrary>], iteration_bounds = array<i64: 4, 2>, scalar_prefetch = 0 : i64, scratch_operands = 0 : i64, tpu.core_type = #tpu.core_type<tc>, window_params = [{transform_indices = @transform_0, window_bounds = array<i64: 64, 128>}, {transform_indices = @transform_1, window_bounds = array<i64: 128, 128>}, {pipeline_mode = #tpu.pipeline_mode<synchronous>, transform_indices = @transform_2, window_bounds = array<i64: 1, 128>}, {pipeline_mode = #tpu.pipeline_mode<synchronous>, transform_indices = @transform_3, window_bounds = array<i64: 1, 128>}, {transform_indices = @transform_4, window_bounds = array<i64: 64, 128>}]} {
    %c0_i32 = arith.constant 0 : i32
    %0 = arith.cmpi eq, %arg1, %c0_i32 : i32
    %1 = arith.extui %0 : i1 to i32
    %c0_i32_0 = arith.constant 0 : i32
    %2 = arith.cmpi ne, %1, %c0_i32_0 : i32
    scf.if %2 {
      %cst_9 = arith.constant 0.000000e+00 : f32
      %12 = vector.broadcast %cst_9 : f32 to vector<64x128xf32>
      %c0_10 = arith.constant 0 : index
      %c0_11 = arith.constant 0 : index
      %13 = vector.load %arg6[%c0_10, %c0_11] : memref<64x128xf32, #tpu.memory_space<vmem>>, vector<64x128xf32>
      tpu.vector_store %arg6[%c0_10, %c0_11], %12 {strides = array<i32>} : memref<64x128xf32, #tpu.memory_space<vmem>>, vector<64x128xf32>,
    } else {
    }
    %c0 = arith.constant 0 : index
    %c0_1 = arith.constant 0 : index
    %3 = vector.load %arg6[%c0, %c0_1] : memref<64x128xf32, #tpu.memory_space<vmem>>, vector<64x128xf32>
    %c0_2 = arith.constant 0 : index
    %c0_3 = arith.constant 0 : index
    %4 = vector.load %arg2[%c0_2, %c0_3] : memref<64x128xf32, #tpu.memory_space<vmem>>, vector<64x128xf32>
    %c0_4 = arith.constant 0 : index
    %c0_5 = arith.constant 0 : index
    %5 = vector.load %arg3[%c0_4, %c0_5] : memref<128x128xf32, #tpu.memory_space<vmem>>, vector<128x128xf32>
    %cst = arith.constant dense<0.000000e+00> : vector<64x128xf32>
    %6 = tpu.matmul %4, %5, %cst {dimension_numbers = #tpu.dot_dimension_numbers<[1], [0], [0], [1], [0, 0, 1, 1], [], []>} : vector<64x128xf32>, vector<128x128xf32>, vector<64x128xf32> -> vector<64x128xf32>
    %7 = arith.addf %3, %6 : vector<64x128xf32>
    %c0_6 = arith.constant 0 : index
    %c0_7 = arith.constant 0 : index
    %8 = vector.load %arg6[%c0_6, %c0_7] : memref<64x128xf32, #tpu.memory_space<vmem>>, vector<64x128xf32>
    tpu.vector_store %arg6[%c0_6, %c0_7], %7 {strides = array<i32>} : memref<64x128xf32, #tpu.memory_space<vmem>>, vector<64x128xf32>,
    %c1_i32 = arith.constant 1 : i32
    %9 = arith.cmpi eq, %arg1, %c1_i32 : i32
    %10 = arith.extui %9 : i1 to i32
    %c0_i32_8 = arith.constant 0 : i32
    %11 = arith.cmpi ne, %10, %c0_i32_8 : i32
    scf.if %11 {
      %c0_9 = arith.constant 0 : index
      %c0_10 = arith.constant 0 : index
      %12 = vector.load %arg6[%c0_9, %c0_10] : memref<64x128xf32, #tpu.memory_space<vmem>>, vector<64x128xf32>
      %cst_11 = arith.constant 0.000000e+00 : f32
      %13 = vector.broadcast %cst_11 : f32 to vector<64x128xf32>
      %14 = arith.maximumf %12, %13 : vector<64x128xf32>
      %cst_12 = arith.constant dense<0.000000e+00> : vector<64xf32>
      %15 = vector.multi_reduction <add>, %14, %cst_12 [1] : vector<64x128xf32> to vector<64xf32>
      %16 = vector.shape_cast %15 : vector<64xf32> to vector<64x1xf32>
      %cst_13 = arith.constant 7.812500e-03 : f32
      %17 = vector.broadcast %cst_13 : f32 to vector<64x1xf32>
      %18 = arith.mulf %16, %17 : vector<64x1xf32>
      %19 = vector.broadcast %18 : vector<64x1xf32> to vector<64x128xf32>
      %20 = arith.subf %14, %19 : vector<64x128xf32>
      %21 = arith.mulf %20, %20 : vector<64x128xf32>
      %cst_14 = arith.constant dense<0.000000e+00> : vector<64xf32>
      %22 = vector.multi_reduction <add>, %21, %cst_14 [1] : vector<64x128xf32> to vector<64xf32>
      %23 = vector.shape_cast %22 : vector<64xf32> to vector<64x1xf32>
      %cst_15 = arith.constant 7.812500e-03 : f32
      %24 = vector.broadcast %cst_15 : f32 to vector<64x1xf32>
      %25 = arith.mulf %23, %24 : vector<64x1xf32>
      %c0_16 = arith.constant 0 : index
      %c0_17 = arith.constant 0 : index
      %26 = vector.load %arg4[%c0_16, %c0_17] : memref<1x128xf32, #tpu.memory_space<vmem>>, vector<1x128xf32>
      %cst_18 = arith.constant 9.99999974E-6 : f32
      %27 = vector.broadcast %cst_18 : f32 to vector<64x1xf32>
      %28 = arith.addf %25, %27 : vector<64x1xf32>
      %29 = math.rsqrt %28 : vector<64x1xf32>
      %30 = vector.broadcast %26 : vector<1x128xf32> to vector<64x128xf32>
      %31 = vector.broadcast %29 : vector<64x1xf32> to vector<64x128xf32>
      %32 = arith.mulf %30, %31 : vector<64x128xf32>
      %33 = arith.mulf %20, %32 : vector<64x128xf32>
      %c0_19 = arith.constant 0 : index
      %c0_20 = arith.constant 0 : index
      %34 = vector.load %arg5[%c0_19, %c0_20] : memref<1x128xf32, #tpu.memory_space<vmem>>, vector<1x128xf32>
      %35 = vector.broadcast %34 : vector<1x128xf32> to vector<64x128xf32>
      %36 = arith.addf %33, %35 : vector<64x128xf32>
      %c0_21 = arith.constant 0 : index
      %c0_22 = arith.constant 0 : index
      %37 = vector.load %arg6[%c0_21, %c0_22] : memref<64x128xf32, #tpu.memory_space<vmem>>, vector<64x128xf32>
      tpu.vector_store %arg6[%c0_21, %c0_22], %36 {strides = array<i32>} : memref<64x128xf32, #tpu.memory_space<vmem>>, vector<64x128xf32>,
    } else {
    }
    return
  }
  func.func @transform_0(%arg0: i32, %arg1: i32) -> (i32, i32) {
    %c0_i32 = arith.constant 0 : i32
    return %arg0, %arg1 : i32, i32
  }
  func.func @transform_1(%arg0: i32, %arg1: i32) -> (i32, i32) {
    %c0_i32 = arith.constant 0 : i32
    %c0_i32_0 = arith.constant 0 : i32
    return %arg1, %c0_i32 : i32, i32
  }
  func.func @transform_2(%arg0: i32, %arg1: i32) -> (i32, i32) {
    %c0_i32 = arith.constant 0 : i32
    %c0_i32_0 = arith.constant 0 : i32
    %c0_i32_1 = arith.constant 0 : i32
    return %c0_i32, %c0_i32_0 : i32, i32
  }
  func.func @transform_3(%arg0: i32, %arg1: i32) -> (i32, i32) {
    %c0_i32 = arith.constant 0 : i32
    %c0_i32_0 = arith.constant 0 : i32
    %c0_i32_1 = arith.constant 0 : i32
    return %c0_i32, %c0_i32_0 : i32, i32
  }
  func.func @transform_4(%arg0: i32, %arg1: i32) -> (i32, i32) {
    %c0_i32 = arith.constant 0 : i32
    %c0_i32_0 = arith.constant 0 : i32
    return %arg0, %c0_i32 : i32, i32
  }
}

</mosaic_0001>

<llo_original>
// kernel: tpu_custom_call.1
$region0: #{tpu_custom_call.1}
  #allocation0 [shape = 'u32[]', space=smem, size = 0x4, offset = 0x4, fixed_abs, tag = 'smem constant byte address 0x4 - core index']
  #allocation1 [shape = 'u32[144,128]{1,0:T(1,128)}', space=vmem, size = 0x12000, scoped, tag = 'internal scratch']
  %s0 = inlined_call_operand.hbm [shape: f32[256,256], index: 0, kind: input, shape index: {}]
  %s1 = inlined_call_operand.hbm [shape: f32[256,128], index: 1, kind: input, shape index: {}]
  %s2 = inlined_call_operand.vmem [shape: f32[1,128], index: 2, kind: input, shape index: {}]
  %s3 = inlined_call_operand.vmem [shape: f32[1,128], index: 3, kind: input, shape index: {}]
  %s4 = inlined_call_operand.hbm [shape: f32[256,128], index: 4, kind: output, shape index: {}]
  %s5 = sld [smem:[#allocation0]]
  $region65: #{tpu_custom_call.1} parent=0
    _
  %s7 = ssub.s32 1, %s5
  %s8 = scalar_select 0, %s7, %s5
  $region1: #{tpu_custom_call.1} parent=0
    #allocation2 [shape = 'u8[65536]{0}', space=vmem, size = 0x10000, scoped, tag = 'input window, operand 0']
    #allocation3 [shape = 's32[2]{0}', space=sflag, size = 0x8, scoped, tag = 'scoped memory for tpu_custom_call.1']
    #allocation4 [shape = 's32[2]{0}', space=sflag, size = 0x8, scoped, tag = 'scoped memory for tpu_custom_call.1']
    #allocation5 [shape = 'u8[131072]{0}', space=vmem, size = 0x20000, scoped, tag = 'input window, operand 1']
    #allocation6 [shape = 's32[2]{0}', space=sflag, size = 0x8, scoped, tag = 'scoped memory for tpu_custom_call.1']
    #allocation7 [shape = 'u8[65536]{0}', space=vmem, size = 0x10000, scoped, tag = 'output window, operand 0']
    %9 = vsyncpa [#allocation3], 0
    %s10 = scalar_lea.sflag [#allocation3], 1
    %11 = vsyncpa %s10, 0
    %12 = vsyncpa [#allocation6], 0
    %s13 = scalar_lea.sflag [#allocation6], 1
    %14 = vsyncpa %s13, 0
    %15 = vsyncpa [#allocation4], 0
    %s16 = scalar_lea.sflag [#allocation4], 1
    %17 = vsyncpa %s16, 0
    loop: start=0, step=1, limit=10
    $region2: #{tpu_custom_call.1} parent=1 // loop_pre_header
      _
    $region3: #{tpu_custom_call.1} parent=1 // loop_header
      %s19 = sphi 0, %s23
      %p20 = scmp.ge.s32.totalorder %s19, 10
      %s26 = sphi 0, %s38
      %s27 = sphi 0, %s34
      %s28 = sphi 0, %s26
      %s29 = sphi 0, %s27
      %s30 = sphi 0, %s28
      %s31 = sphi 0, %s29
      %s43 = sphi 0, %s45
      %s46 = sphi 0, %s43
      %s47 = sphi 0, %s46
      %s63 = sphi 0, %s47
      %s69 = sphi 0, %s71
      %s72 = sphi 0, %s69
      %s73 = sphi 0, %s72
      %s89 = sphi 0, %s73
      %s93 = sphi 0, %s93
      %s95 = sphi 0, %s93
      %s96 = sphi 0, %s95
      %s110 = sphi 0, %s96
      %s114 = sphi 0, %s114
      %s116 = sphi 0, %s114
      %s117 = sphi 0, %s116
      %s131 = sphi 0, %s117
      %s137 = sphi 0, %s139
      %s140 = sphi 0, %s137
      %s141 = sphi 0, %s140
      %s157 = sphi 0, %s141
    $region4: #{tpu_custom_call.1} parent=1 // loop_header_branch
      %22 = sbr.rel (%p20) target = $region8
    $region5: #{tpu_custom_call.1} parent=1 // loop_body
      %s24 = ssub.s32 %s19, 1
      %s25 = ssub.s32 %s19, 2
      %s32 = sadd.s32 1, %s27
      %p33 = scmp.ge.s32.totalorder %s32, 2
      %s34 = scalar_select %p33, 0, %s32
      %s35 = sadd.s32 1, %s26
      %s36 = scalar_select %p33, %s35, %s26
      %p37 = scmp.ge.s32.totalorder %s36, 4
      %s38 = scalar_select %p37, 0, %s36
      %s39 = ssub.s32 %s26, %s38
      %s40 = ssub.s32 %s27, %s34
      %s41 = sor.u32 %s39, %s40
      %p42 = scmp.eq.s32.totalorder %s41, 0
      %s44 = sadd.s32 %s43, 1
      %s45 = scalar_select %p42, %s43, %s44
      %p48 = pneg %p42
      %p49 = scmp.eq.s32.totalorder %s19, 7
      %p50 = por %p48, %p49
      %p51 = scmp.ne.s32.totalorder %s43, %s46
      %p52 = scmp.eq.s32.totalorder %s19, 0
      %p53 = por %p51, %p52
      %p54 = scmp.ne.s32.totalorder %s43, %s46
      %p55 = scmp.eq.s32.totalorder %s24, 7
      %p56 = por %p54, %p55
      %p57 = scmp.ne.s32.totalorder %s46, %s47
      %p58 = scmp.eq.s32.totalorder %s24, 0
      %p59 = por %p57, %p58
      %p60 = scmp.ne.s32.totalorder %s46, %s47
      %p61 = scmp.eq.s32.totalorder %s25, 7
      %p62 = por %p60, %p61
      %p64 = scmp.ne.s32.totalorder %s47, %s63
      %p65 = scmp.eq.s32.totalorder %s25, 0
      %p66 = por %p64, %p65
      %s67 = ssub.s32 %s27, %s34
      %p68 = scmp.eq.s32.totalorder %s67, 0
      %s70 = sadd.s32 %s69, 1
      %s71 = scalar_select %p68, %s69, %s70
      %p74 = pneg %p68
      %p75 = scmp.eq.s32.totalorder %s19, 7
      %p76 = por %p74, %p75
      %p77 = scmp.ne.s32.totalorder %s69, %s72
      %p78 = scmp.eq.s32.totalorder %s19, 0
      %p79 = por %p77, %p78
      %p80 = scmp.ne.s32.totalorder %s69, %s72
      %p81 = scmp.eq.s32.totalorder %s24, 7
      %p82 = por %p80, %p81
      %p83 = scmp.ne.s32.totalorder %s72, %s73
      %p84 = scmp.eq.s32.totalorder %s24, 0
      %p85 = por %p83, %p84
      %p86 = scmp.ne.s32.totalorder %s72, %s73
      %p87 = scmp.eq.s32.totalorder %s25, 7
      %p88 = por %p86, %p87
      %p90 = scmp.ne.s32.totalorder %s73, %s89
      %p91 = scmp.eq.s32.totalorder %s25, 0
      %p92 = por %p90, %p91
      %s94 = sadd.s32 %s93, 1
      %p97 = scmp.eq.s32.totalorder %s19, 7
      %p98 = scmp.ne.s32.totalorder %s93, %s95
      %p99 = scmp.eq.s32.totalorder %s19, 0
      %p100 = por %p98, %p99
      %p101 = scmp.ne.s32.totalorder %s93, %s95
      %p102 = scmp.eq.s32.totalorder %s24, 7
      %p103 = por %p101, %p102
      %p104 = scmp.ne.s32.totalorder %s95, %s96
      %p105 = scmp.eq.s32.totalorder %s24, 0
      %p106 = por %p104, %p105
      %p107 = scmp.ne.s32.totalorder %s95, %s96
      %p108 = scmp.eq.s32.totalorder %s25, 7
      %p109 = por %p107, %p108
      %p111 = scmp.ne.s32.totalorder %s96, %s110
      %p112 = scmp.eq.s32.totalorder %s25, 0
      %p113 = por %p111, %p112
      %s115 = sadd.s32 %s114, 1
      %p118 = scmp.eq.s32.totalorder %s19, 7
      %p119 = scmp.ne.s32.totalorder %s114, %s116
      %p120 = scmp.eq.s32.totalorder %s19, 0
      %p121 = por %p119, %p120
      %p122 = scmp.ne.s32.totalorder %s114, %s116
      %p123 = scmp.eq.s32.totalorder %s24, 7
      %p124 = por %p122, %p123
      %p125 = scmp.ne.s32.totalorder %s116, %s117
      %p126 = scmp.eq.s32.totalorder %s24, 0
      %p127 = por %p125, %p126
      %p128 = scmp.ne.s32.totalorder %s116, %s117
      %p129 = scmp.eq.s32.totalorder %s25, 7
      %p130 = por %p128, %p129
      %p132 = scmp.ne.s32.totalorder %s117, %s131
      %p133 = scmp.eq.s32.totalorder %s25, 0
      %p134 = por %p132, %p133
      %s135 = ssub.s32 %s26, %s38
      %p136 = scmp.eq.s32.totalorder %s135, 0
      %s138 = sadd.s32 %s137, 1
      %s139 = scalar_select %p136, %s137, %s138
      %p142 = pneg %p136
      %p143 = scmp.eq.s32.totalorder %s19, 7
      %p144 = por %p142, %p143
      %p145 = scmp.ne.s32.totalorder %s137, %s140
      %p146 = scmp.eq.s32.totalorder %s19, 0
      %p147 = por %p145, %p146
      %p148 = scmp.ne.s32.totalorder %s137, %s140
      %p149 = scmp.eq.s32.totalorder %s24, 7
      %p150 = por %p148, %p149
      %p151 = scmp.ne.s32.totalorder %s140, %s141
      %p152 = scmp.eq.s32.totalorder %s24, 0
      %p153 = por %p151, %p152
      %p154 = scmp.ne.s32.totalorder %s140, %s141
      %p155 = scmp.eq.s32.totalorder %s25, 7
      %p156 = por %p154, %p155
      %p158 = scmp.ne.s32.totalorder %s141, %s157
      %p159 = scmp.eq.s32.totalorder %s25, 0
      %p160 = por %p158, %p159
      %p161 = scmp.le.s32.totalorder 1, %s19
      %p162 = scmp.lt.s32.totalorder %s19, 9
      %p163 = pnand %p161, %p162
      %p164 = pneg %p163
      // Predicated region
      $region9: #{tpu_custom_call.1} parent=5 // pred_check
        _
      $region10: #{tpu_custom_call.1} parent=5 // pred_check_branch
        %166 = sbr.rel (%p163) target = $region12
      $region11: #{tpu_custom_call.1} parent=5 // pred_region
        %s167 = ssub.s32 %s19, 1
        // Predicated region
        $region13: #{tpu_custom_call.1} parent=11 // pred_check
          %p168 = pneg %p106
        $region14: #{tpu_custom_call.1} parent=11 // pred_check_branch
          %170 = sbr.rel (%p168) target = $region16
        $region15: #{tpu_custom_call.1} parent=11 // pred_region
          _
        $region16: #{tpu_custom_call.1} parent=11 // pred_fallthru
          _
        // Predicated region
        $region17: #{tpu_custom_call.1} parent=11 // pred_check
          %p171 = pneg %p127
        $region18: #{tpu_custom_call.1} parent=11 // pred_check_branch
          %173 = sbr.rel (%p171) target = $region20
        $region19: #{tpu_custom_call.1} parent=11 // pred_region
          _
        $region20: #{tpu_custom_call.1} parent=11 // pred_fallthru
          _
      $region12: #{tpu_custom_call.1} parent=5 // pred_fallthru
        _
      %p174 = scmp.lt.s32.totalorder %s19, 8
      // Predicated region
      $region21: #{tpu_custom_call.1} parent=5 // pred_check
        %p175 = pneg %p174
      $region22: #{tpu_custom_call.1} parent=5 // pred_check_branch
        %177 = sbr.rel (%p175) target = $region24
      $region23: #{tpu_custom_call.1} parent=5 // pred_region
        // Predicated region
        $region25: #{tpu_custom_call.1} parent=23 // pred_check
          %p178 = pneg %p53
        $region26: #{tpu_custom_call.1} parent=23 // pred_check_branch
          %180 = sbr.rel (%p178) target = $region28
        $region27: #{tpu_custom_call.1} parent=23 // pred_region
          %s181 = sand.u32 %s43, 1
          %s182 = scalar_lea.sflag [#allocation3], %s181
          %s183 = sand.u32 %s43, 1
          %s184 = smul.addr %s183, 64
          %s185 = scalar_lea.vmem [#allocation2], %s184
          %s186 = smul.u32 8, %s26
          %s188 = ssub.s32 1024, 1024
          %189 = vsyncadd %s182, %s188
          %s190 = smul.addr %s186, 2
          %s191 = sadd.s32 %s27, %s190
          %s192 = smul.addr %s191, 128
          %s193 = scalar_lea.hbm %s0, %s192
          %s194 = sshll.u32 %s185, 4
          %s195 = int_to_ptr.vmem [resolvable:$true] %s194
          %200 = dma.hbm_to_vmem [thread:$0]  %s193, 1024, %s195, %s182, 256, 128, 8
        $region28: #{tpu_custom_call.1} parent=23 // pred_fallthru
          _
        // Predicated region
        $region29: #{tpu_custom_call.1} parent=23 // pred_check
          %p201 = pneg %p79
        $region30: #{tpu_custom_call.1} parent=23 // pred_check_branch
          %203 = sbr.rel (%p201) target = $region32
        $region31: #{tpu_custom_call.1} parent=23 // pred_region
          %s204 = sand.u32 %s69, 1
          %s205 = scalar_lea.sflag [#allocation6], %s204
          %s206 = sand.u32 %s69, 1
          %s207 = smul.addr %s206, 128
          %s208 = scalar_lea.vmem [#allocation5], %s207
          %s209 = smul.u32 16, %s27
          %s211 = ssub.s32 2048, 2048
          %212 = vsyncadd %s205, %s211
          %s213 = smul.addr %s209, 128
          %s214 = scalar_lea.hbm %s1, %s213
          %s215 = sshll.u32 %s208, 4
          %s216 = int_to_ptr.vmem [resolvable:$true] %s215
          %221 = dma.hbm_to_vmem [thread:$0]  %s214, 2048, %s216, %s205, 128, 128, 8
        $region32: #{tpu_custom_call.1} parent=23 // pred_fallthru
          _
      $region24: #{tpu_custom_call.1} parent=5 // pred_fallthru
        _
      %p222 = scmp.le.s32.totalorder 1, %s19
      %p223 = scmp.lt.s32.totalorder %s19, 9
      %p224 = pnand %p222, %p223
      %p225 = pneg %p224
      // Predicated region
      $region33: #{tpu_custom_call.1} parent=5 // pred_check
        _
      $region34: #{tpu_custom_call.1} parent=5 // pred_check_branch
        %227 = sbr.rel (%p224) target = $region36
      $region35: #{tpu_custom_call.1} parent=5 // pred_region
        %s228 = ssub.s32 %s19, 1
        %s229 = sand.u32 %s46, 1
        %s230 = scalar_lea.sflag [#allocation3], %s229
        %s231 = sand.u32 %s46, 1
        %s232 = smul.addr %s231, 64
        %s233 = scalar_lea.vmem [#allocation2], %s232
        // Predicated region
        $region37: #{tpu_custom_call.1} parent=35 // pred_check
          %p234 = pneg %p59
        $region38: #{tpu_custom_call.1} parent=35 // pred_check_branch
          %236 = sbr.rel (%p234) target = $region40
        $region39: #{tpu_custom_call.1} parent=35 // pred_region
          %237 = dma.done %s230, 1024
        $region40: #{tpu_custom_call.1} parent=35 // pred_fallthru
          _
        %s238 = sand.u32 %s72, 1
        %s239 = scalar_lea.sflag [#allocation6], %s238
        %s240 = sand.u32 %s72, 1
        %s241 = smul.addr %s240, 128
        %s242 = scalar_lea.vmem [#allocation5], %s241
        // Predicated region
        $region41: #{tpu_custom_call.1} parent=35 // pred_check
          %p243 = pneg %p85
        $region42: #{tpu_custom_call.1} parent=35 // pred_check_branch
          %245 = sbr.rel (%p243) target = $region44
        $region43: #{tpu_custom_call.1} parent=35 // pred_region
          %246 = dma.done %s239, 2048
        $region44: #{tpu_custom_call.1} parent=35 // pred_fallthru
          _
        %s247 = sand.u32 %s46, 1
        %s248 = scalar_lea.sflag [#allocation3], %s247
        %s249 = sand.u32 %s46, 1
        %s250 = smul.addr %s249, 64
        %s251 = scalar_lea.vmem [#allocation2], %s250
        %p252 = pneg %p59
        %p253 = pneg %p56
        %s254 = sand.u32 %s72, 1
        %s255 = scalar_lea.sflag [#allocation6], %s254
        %s256 = sand.u32 %s72, 1
        %s257 = smul.addr %s256, 128
        %s258 = scalar_lea.vmem [#allocation5], %s257
        %p259 = pneg %p85
        %p260 = pneg %p82
        %p261 = pneg %p106
        %p262 = pneg %p103
        %p263 = pneg %p127
        %p264 = pneg %p124
        %p265 = pneg %p153
        %p266 = pneg %p150
        %s267 = sand.u32 %s140, 1
        %s268 = scalar_lea.sflag [#allocation4], %s267
        %s269 = sand.u32 %s140, 1
        %s270 = smul.addr %s269, 64
        %s271 = scalar_lea.vmem [#allocation7], %s270
        %s272 = smul.u32 8, %s28
        %s273 = smul.u32 16, %s29
        %s274 = smul.u32 8, %s28
        %p275 = scmp.eq.s32.totalorder %s29, 0
        // Predicated region
        $region45: #{tpu_custom_call.1} parent=35 // pred_check
          %p276 = pneg %p275
        $region46: #{tpu_custom_call.1} parent=35 // pred_check_branch
          %278 = sbr.rel (%p276) target = $region48
        $region47: #{tpu_custom_call.1} parent=35 // pred_region
          %279 = vst [vmem:[%s271] sm:$0xff] 0.0
          %280 = vst [vmem:[%s271 + $0x8] sm:$0xff] 0.0
          %281 = vst [vmem:[%s271 + $0x10] sm:$0xff] 0.0
          %282 = vst [vmem:[%s271 + $0x18] sm:$0xff] 0.0
          %283 = vst [vmem:[%s271 + $0x20] sm:$0xff] 0.0
          %284 = vst [vmem:[%s271 + $0x28] sm:$0xff] 0.0
          %285 = vst [vmem:[%s271 + $0x30] sm:$0xff] 0.0
          %286 = vst [vmem:[%s271 + $0x38] sm:$0xff] 0.0
        $region48: #{tpu_custom_call.1} parent=35 // pred_fallthru
          _
        %v287 = vld [vmem:[%s271] sm:$0xff]
        %v288 = vld [vmem:[%s271 + $0x8] sm:$0xff]
        %v289 = vld [vmem:[%s271 + $0x10] sm:$0xff]
        %v290 = vld [vmem:[%s271 + $0x18] sm:$0xff]
        %v291 = vld [vmem:[%s271 + $0x20] sm:$0xff]
        %v292 = vld [vmem:[%s271 + $0x28] sm:$0xff]
        %v293 = vld [vmem:[%s271 + $0x30] sm:$0xff]
        %v294 = vld [vmem:[%s271 + $0x38] sm:$0xff]
        %v295 = vld [vmem:[%s233] sm:$0xff]
        %v296 = vld [vmem:[%s233 + $0x8] sm:$0xff]
        %v297 = vld [vmem:[%s233 + $0x10] sm:$0xff]
        %v298 = vld [vmem:[%s233 + $0x18] sm:$0xff]
        %v299 = vld [vmem:[%s233 + $0x20] sm:$0xff]
        %v300 = vld [vmem:[%s233 + $0x28] sm:$0xff]
        %v301 = vld [vmem:[%s233 + $0x30] sm:$0xff]
        %v302 = vld [vmem:[%s233 + $0x38] sm:$0xff]
        %v303 = vld [vmem:[%s242] sm:$0xff]
        %v304 = vld [vmem:[%s242 + $0x8] sm:$0xff]
        %v305 = vld [vmem:[%s242 + $0x10] sm:$0xff]
        %v306 = vld [vmem:[%s242 + $0x18] sm:$0xff]
        %v307 = vld [vmem:[%s242 + $0x20] sm:$0xff]
        %v308 = vld [vmem:[%s242 + $0x28] sm:$0xff]
        %v309 = vld [vmem:[%s242 + $0x30] sm:$0xff]
        %v310 = vld [vmem:[%s242 + $0x38] sm:$0xff]
        %v311 = vld [vmem:[%s242 + $0x40] sm:$0xff]
        %v312 = vld [vmem:[%s242 + $0x48] sm:$0xff]
        %v313 = vld [vmem:[%s242 + $0x50] sm:$0xff]
        %v314 = vld [vmem:[%s242 + $0x58] sm:$0xff]
        %v315 = vld [vmem:[%s242 + $0x60] sm:$0xff]
        %v316 = vld [vmem:[%s242 + $0x68] sm:$0xff]
        %v317 = vld [vmem:[%s242 + $0x70] sm:$0xff]
        %v318 = vld [vmem:[%s242 + $0x78] sm:$0xff]
        %319 = vmatprep.subr.mxu0 0.0
        %320 = vmatpush1.msra.mxu0 %v318
        %321 = vmatprep.subr.mxu0 0.0
        %322 = vmatpush1.msra.mxu0 %v317
        %323 = vmatprep.subr.mxu0 0.0
        %324 = vmatpush1.msra.mxu0 %v316
        %325 = vmatprep.subr.mxu0 0.0
        %326 = vmatpush1.msra.mxu0 %v315
        %327 = vmatprep.subr.mxu0 0.0
        %328 = vmatpush1.msra.mxu0 %v314
        %329 = vmatprep.subr.mxu0 0.0
        %330 = vmatpush1.msra.mxu0 %v313
        %331 = vmatprep.subr.mxu0 0.0
        %332 = vmatpush1.msra.mxu0 %v312
        %333 = vmatprep.subr.mxu0 0.0
        %334 = vmatpush1.msra.mxu0 %v311
        %335 = vmatprep.subr.mxu0 0.0
        %336 = vmatpush1.msra.mxu0 %v310
        %337 = vmatprep.subr.mxu0 0.0
        %338 = vmatpush1.msra.mxu0 %v309
        %339 = vmatprep.subr.mxu0 0.0
        %340 = vmatpush1.msra.mxu0 %v308
        %341 = vmatprep.subr.mxu0 0.0
        %342 = vmatpush1.msra.mxu0 %v307
        %343 = vmatprep.subr.mxu0 0.0
        %344 = vmatpush1.msra.mxu0 %v306
        %345 = vmatprep.subr.mxu0 0.0
        %346 = vmatpush1.msra.mxu0 %v305
        %347 = vmatprep.subr.mxu0 0.0
        %348 = vmatpush1.msra.mxu0 %v304
        %349 = vmatprep.subr.mxu0 0.0
        %350 = vmatpush1.msra.mxu0 %v303
        %351 = vmatprep.subr.mxu0 0.0
        %352 = vmatpush2.msra.mxu0 0.0
        %353 = vmatprep.subr.mxu0 0.0
        %354 = vmatpush2.msra.mxu0 0.0
        %355 = vmatprep.subr.mxu0 0.0
        %356 = vmatpush2.msra.mxu0 0.0
        %357 = vmatprep.subr.mxu0 0.0
        %358 = vmatpush2.msra.mxu0 0.0
        %359 = vmatprep.subr.mxu0 0.0
        %360 = vmatpush2.msra.mxu0 0.0
        %361 = vmatprep.subr.mxu0 0.0
        %362 = vmatpush2.msra.mxu0 0.0
        %363 = vmatprep.subr.mxu0 0.0
        %364 = vmatpush2.msra.mxu0 0.0
        %365 = vmatprep.subr.mxu0 0.0
        %366 = vmatpush2.msra.mxu0 0.0
        %367 = vmatprep.subr.mxu0 0.0
        %368 = vmatpush2.msra.mxu0 0.0
        %369 = vmatprep.subr.mxu0 0.0
        %370 = vmatpush2.msra.mxu0 0.0
        %371 = vmatprep.subr.mxu0 0.0
        %372 = vmatpush2.msra.mxu0 0.0
        %373 = vmatprep.subr.mxu0 0.0
        %374 = vmatpush2.msra.mxu0 0.0
        %375 = vmatprep.subr.mxu0 0.0
        %376 = vmatpush2.msra.mxu0 0.0
        %377 = vmatprep.subr.mxu0 0.0
        %378 = vmatpush2.msra.mxu0 0.0
        %379 = vmatprep.subr.mxu0 0.0
        %380 = vmatpush2.msra.mxu0 0.0
        %381 = vmatprep.subr.mxu0 0.0
        %382 = vmatpush2.msra.mxu0 0.0
        %383 = vmatprep.mubr.f32.mxu0 0.0
        %384 = vmatmul.mubr.f32.gmra.mxu0 %v295
        %v385 = vpop.f32.mrf.mxu0
        %v386 = vadd.f32 0.0, %v385
        %v387 = vpop.f32.mrf.mxu0
        %388 = vmatprep.mubr.f32.mxu0 0.0
        %389 = vmatmul.mubr.f32.gmra.mxu0 %v296
        %v390 = vpop.f32.mrf.mxu0
        %v391 = vadd.f32 0.0, %v390
        %v392 = vpop.f32.mrf.mxu0
        %393 = vmatprep.mubr.f32.mxu0 0.0
        %394 = vmatmul.mubr.f32.gmra.mxu0 %v297
        %v395 = vpop.f32.mrf.mxu0
        %v396 = vadd.f32 0.0, %v395
        %v397 = vpop.f32.mrf.mxu0
        %398 = vmatprep.mubr.f32.mxu0 0.0
        %399 = vmatmul.mubr.f32.gmra.mxu0 %v298
        %v400 = vpop.f32.mrf.mxu0
        %v401 = vadd.f32 0.0, %v400
        %v402 = vpop.f32.mrf.mxu0
        %403 = vmatprep.mubr.f32.mxu0 0.0
        %404 = vmatmul.mubr.f32.gmra.mxu0 %v299
        %v405 = vpop.f32.mrf.mxu0
        %v406 = vadd.f32 0.0, %v405
        %v407 = vpop.f32.mrf.mxu0
        %408 = vmatprep.mubr.f32.mxu0 0.0
        %409 = vmatmul.mubr.f32.gmra.mxu0 %v300
        %v410 = vpop.f32.mrf.mxu0
        %v411 = vadd.f32 0.0, %v410
        %v412 = vpop.f32.mrf.mxu0
        %413 = vmatprep.mubr.f32.mxu0 0.0
        %414 = vmatmul.mubr.f32.gmra.mxu0 %v301
        %v415 = vpop.f32.mrf.mxu0
        %v416 = vadd.f32 0.0, %v415
        %v417 = vpop.f32.mrf.mxu0
        %418 = vmatprep.mubr.f32.mxu0 0.0
        %419 = vmatmul.mubr.f32.gmra.mxu0 %v302
        %v420 = vpop.f32.mrf.mxu0
        %v421 = vadd.f32 0.0, %v420
        %v422 = vpop.f32.mrf.mxu0
        %423 = vdwg.mxu0
        %v424 = vadd.f32 %v287, %v386
        %v425 = vadd.f32 %v288, %v391
        %v426 = vadd.f32 %v289, %v396
        %v427 = vadd.f32 %v290, %v401
        %v428 = vadd.f32 %v291, %v406
        %v429 = vadd.f32 %v292, %v411
        %v430 = vadd.f32 %v293, %v416
        %v431 = vadd.f32 %v294, %v421
        %432 = vst [vmem:[%s271] sm:$0xff] %v424
        %433 = vst [vmem:[%s271 + $0x8] sm:$0xff] %v425
        %434 = vst [vmem:[%s271 + $0x10] sm:$0xff] %v426
        %435 = vst [vmem:[%s271 + $0x18] sm:$0xff] %v427
        %436 = vst [vmem:[%s271 + $0x20] sm:$0xff] %v428
        %437 = vst [vmem:[%s271 + $0x28] sm:$0xff] %v429
        %438 = vst [vmem:[%s271 + $0x30] sm:$0xff] %v430
        %439 = vst [vmem:[%s271 + $0x38] sm:$0xff] %v431
        %p440 = scmp.eq.s32.totalorder %s29, 1
        // Predicated region
        $region49: #{tpu_custom_call.1} parent=35 // pred_check
          %p441 = pneg %p440
        $region50: #{tpu_custom_call.1} parent=35 // pred_check_branch
          %443 = sbr.rel (%p441) target = $region52
        $region51: #{tpu_custom_call.1} parent=35 // pred_region
          %v444 = vld [vmem:[%s271] sm:$0xff]
          %v445 = vld [vmem:[%s271 + $0x8] sm:$0xff]
          %v446 = vld [vmem:[%s271 + $0x10] sm:$0xff]
          %v447 = vld [vmem:[%s271 + $0x18] sm:$0xff]
          %v448 = vld [vmem:[%s271 + $0x20] sm:$0xff]
          %v449 = vld [vmem:[%s271 + $0x28] sm:$0xff]
          %v450 = vld [vmem:[%s271 + $0x30] sm:$0xff]
          %v451 = vld [vmem:[%s271 + $0x38] sm:$0xff]
          %v452 = vmax.f32 %v444, 0.0
          %v453 = vmax.f32 %v445, 0.0
          %v454 = vmax.f32 %v446, 0.0
          %v455 = vmax.f32 %v447, 0.0
          %v456 = vmax.f32 %v448, 0.0
          %v457 = vmax.f32 %v449, 0.0
          %v458 = vmax.f32 %v450, 0.0
          %v459 = vmax.f32 %v451, 0.0
          %460 = vadd.xlane.f32.xlu0 %v452
          %v461 = vpop.xlane.xlu0 %460
          %462 = vadd.xlane.f32.xlu0 %v453
          %v463 = vpop.xlane.xlu0 %462
          %464 = vadd.xlane.f32.xlu0 %v454
          %v465 = vpop.xlane.xlu0 %464
          %466 = vadd.xlane.f32.xlu0 %v455
          %v467 = vpop.xlane.xlu0 %466
          %468 = vadd.xlane.f32.xlu0 %v456
          %v469 = vpop.xlane.xlu0 %468
          %470 = vadd.xlane.f32.xlu0 %v457
          %v471 = vpop.xlane.xlu0 %470
          %472 = vadd.xlane.f32.xlu0 %v458
          %v473 = vpop.xlane.xlu0 %472
          %474 = vadd.xlane.f32.xlu0 %v459
          %v475 = vpop.xlane.xlu0 %474
          %v476 = vmul.f32 %v461, 0.0078125
          %v477 = vmul.f32 %v463, 0.0078125
          %v478 = vmul.f32 %v465, 0.0078125
          %v479 = vmul.f32 %v467, 0.0078125
          %v480 = vmul.f32 %v469, 0.0078125
          %v481 = vmul.f32 %v471, 0.0078125
          %v482 = vmul.f32 %v473, 0.0078125
          %v483 = vmul.f32 %v475, 0.0078125
          %v484 = vsub.f32 %v452, %v476
          %v485 = vsub.f32 %v453, %v477
          %v486 = vsub.f32 %v454, %v478
          %v487 = vsub.f32 %v455, %v479
          %v488 = vsub.f32 %v456, %v480
          %v489 = vsub.f32 %v457, %v481
          %v490 = vsub.f32 %v458, %v482
          %v491 = vsub.f32 %v459, %v483
          %v492 = vmul.f32 %v484, %v484
          %v493 = vmul.f32 %v485, %v485
          %v494 = vmul.f32 %v486, %v486
          %v495 = vmul.f32 %v487, %v487
          %v496 = vmul.f32 %v488, %v488
          %v497 = vmul.f32 %v489, %v489
          %v498 = vmul.f32 %v490, %v490
          %v499 = vmul.f32 %v491, %v491
          %500 = vadd.xlane.f32.xlu0 %v492
          %v501 = vpop.xlane.xlu0 %500
          %502 = vadd.xlane.f32.xlu0 %v493
          %v503 = vpop.xlane.xlu0 %502
          %504 = vadd.xlane.f32.xlu0 %v494
          %v505 = vpop.xlane.xlu0 %504
          %506 = vadd.xlane.f32.xlu0 %v495
          %v507 = vpop.xlane.xlu0 %506
          %508 = vadd.xlane.f32.xlu0 %v496
          %v509 = vpop.xlane.xlu0 %508
          %510 = vadd.xlane.f32.xlu0 %v497
          %v511 = vpop.xlane.xlu0 %510
          %512 = vadd.xlane.f32.xlu0 %v498
          %v513 = vpop.xlane.xlu0 %512
          %514 = vadd.xlane.f32.xlu0 %v499
          %v515 = vpop.xlane.xlu0 %514
          %v516 = vmul.f32 %v501, 0.0078125
          %v517 = vmul.f32 %v503, 0.0078125
          %v518 = vmul.f32 %v505, 0.0078125
          %v519 = vmul.f32 %v507, 0.0078125
          %v520 = vmul.f32 %v509, 0.0078125
          %v521 = vmul.f32 %v511, 0.0078125
          %v522 = vmul.f32 %v513, 0.0078125
          %v523 = vmul.f32 %v515, 0.0078125
          %v524 = vld [vmem:[%s2] sm:$0x1]
          %v525 = vadd.f32 %v516, 1e-05
          %v526 = vadd.f32 %v517, 1e-05
          %v527 = vadd.f32 %v518, 1e-05
          %v528 = vadd.f32 %v519, 1e-05
          %v529 = vadd.f32 %v520, 1e-05
          %v530 = vadd.f32 %v521, 1e-05
          %v531 = vadd.f32 %v522, 1e-05
          %v532 = vadd.f32 %v523, 1e-05
          %v533 = vrsqrt.pop %v525
          %v534 = vrsqrt.pop %v526
          %v535 = vrsqrt.pop %v527
          %v536 = vrsqrt.pop %v528
          %v537 = vrsqrt.pop %v529
          %v538 = vrsqrt.pop %v530
          %v539 = vrsqrt.pop %v531
          %v540 = vrsqrt.pop %v532
          %v542 = vlaneseq
          %v543 = vshrl.u32 %v542, 7
          %v544 = vsub.s32 0, %v543
          %v545 = vrot.slane %v524, %v544
          %v547 = vmul.f32 %v545, %v533
          %v548 = vmul.f32 %v545, %v534
          %v549 = vmul.f32 %v545, %v535
          %v550 = vmul.f32 %v545, %v536
          %v551 = vmul.f32 %v545, %v537
          %v552 = vmul.f32 %v545, %v538
          %v553 = vmul.f32 %v545, %v539
          %v554 = vmul.f32 %v545, %v540
          %v555 = vmul.f32 %v484, %v547
          %v556 = vmul.f32 %v485, %v548
          %v557 = vmul.f32 %v486, %v549
          %v558 = vmul.f32 %v487, %v550
          %v559 = vmul.f32 %v488, %v551
          %v560 = vmul.f32 %v489, %v552
          %v561 = vmul.f32 %v490, %v553
          %v562 = vmul.f32 %v491, %v554
          %v563 = vld [vmem:[%s3] sm:$0x1]
          %v565 = vlaneseq
          %v566 = vshrl.u32 %v565, 7
          %v567 = vsub.s32 0, %v566
          %v568 = vrot.slane %v563, %v567
          %v570 = vadd.f32 %v555, %v568
          %v571 = vadd.f32 %v556, %v568
          %v572 = vadd.f32 %v557, %v568
          %v573 = vadd.f32 %v558, %v568
          %v574 = vadd.f32 %v559, %v568
          %v575 = vadd.f32 %v560, %v568
          %v576 = vadd.f32 %v561, %v568
          %v577 = vadd.f32 %v562, %v568
          %578 = vst [vmem:[%s271] sm:$0xff] %v570
          %579 = vst [vmem:[%s271 + $0x8] sm:$0xff] %v571
          %580 = vst [vmem:[%s271 + $0x10] sm:$0xff] %v572
          %581 = vst [vmem:[%s271 + $0x18] sm:$0xff] %v573
          %582 = vst [vmem:[%s271 + $0x20] sm:$0xff] %v574
          %583 = vst [vmem:[%s271 + $0x28] sm:$0xff] %v575
          %584 = vst [vmem:[%s271 + $0x30] sm:$0xff] %v576
          %585 = vst [vmem:[%s271 + $0x38] sm:$0xff] %v577
        $region52: #{tpu_custom_call.1} parent=35 // pred_fallthru
          _
        %s586 = sand.u32 %s140, 1
        %s587 = scalar_lea.sflag [#allocation4], %s586
        %s588 = sand.u32 %s140, 1
        %s589 = smul.addr %s588, 64
        %s590 = scalar_lea.vmem [#allocation7], %s589
        // Predicated region
        $region53: #{tpu_custom_call.1} parent=35 // pred_check
          %p591 = pneg %p150
        $region54: #{tpu_custom_call.1} parent=35 // pred_check_branch
          %593 = sbr.rel (%p591) target = $region56
        $region55: #{tpu_custom_call.1} parent=35 // pred_region
          %s594 = smul.u32 8, %s28
          %s596 = ssub.s32 1024, 1024
          %597 = vsyncadd %s587, %s596
          %s598 = smul.addr %s594, 128
          %s599 = scalar_lea.hbm %s4, %s598
          %s600 = sshll.u32 %s590, 4
          %s601 = int_to_ptr.vmem [resolvable:$true] %s600
          %606 = dma.vmem_to_hbm [thread:$0]  %s601, 1024, %s599, %s587, 128, 128, 8
        $region56: #{tpu_custom_call.1} parent=35 // pred_fallthru
          _
      $region36: #{tpu_custom_call.1} parent=5 // pred_fallthru
        _
      %p607 = scmp.le.s32.totalorder 2, %s19
      // Predicated region
      $region57: #{tpu_custom_call.1} parent=5 // pred_check
        %p608 = pneg %p607
      $region58: #{tpu_custom_call.1} parent=5 // pred_check_branch
        %610 = sbr.rel (%p608) target = $region60
      $region59: #{tpu_custom_call.1} parent=5 // pred_region
        %s611 = ssub.s32 %s19, 2
        // Predicated region
        $region61: #{tpu_custom_call.1} parent=59 // pred_check
          %p612 = pneg %p156
        $region62: #{tpu_custom_call.1} parent=59 // pred_check_branch
          %614 = sbr.rel (%p612) target = $region64
        $region63: #{tpu_custom_call.1} parent=59 // pred_region
          %s615 = sand.u32 %s141, 1
          %s616 = scalar_lea.sflag [#allocation4], %s615
          %s617 = sand.u32 %s141, 1
          %s618 = smul.addr %s617, 64
          %s619 = scalar_lea.vmem [#allocation7], %s618
          %620 = dma.done %s616, 1024
        $region64: #{tpu_custom_call.1} parent=59 // pred_fallthru
          _
      $region60: #{tpu_custom_call.1} parent=5 // pred_fallthru
        _
    $region6: #{tpu_custom_call.1} parent=1 // loop_footer
      %s23 = sadd.s32 1, %s19
    $region7: #{tpu_custom_call.1} parent=1 // loop_footer_branch
      %18 = sbr.rel target = $region3
    $region8: #{tpu_custom_call.1} parent=1 // loop_exit
      _
    %621 = vsyncpa [#allocation3], 1
    %s622 = scalar_lea.sflag [#allocation3], 1
    %623 = vsyncpa %s622, 1
    %624 = vsyncpa [#allocation6], 1
    %s625 = scalar_lea.sflag [#allocation6], 1
    %626 = vsyncpa %s625, 1
    %627 = vsyncpa [#allocation4], 1
    %s628 = scalar_lea.sflag [#allocation4], 1
    %629 = vsyncpa %s628, 1

</llo_original>
